<compile_context>
chip_gen: v6e
topology: v6e:2x2x1
jax: 0.10.0
libtpu: 0.0.40
codegen_flags: <defaults>
</compile_context>

<pallas_src>
import math
import functools

import jax
import jax.numpy as jnp
from jax import lax
from jax.experimental import pallas as pl
from jax.experimental.pallas import tpu as pltpu


# Per-generation VMEM budget: ~3/4 of physical, capped at 96 MiB
# (-> 96 MiB on v5e/v6e 128 MiB VMEM, 48 MiB on v7x 64 MiB/TC).
try:
    _VMEM_CAP = int(pltpu.get_tpu_info().vmem_capacity_bytes)
except Exception:  # pragma: no cover - older jax / non-TPU trace host
    _VMEM_CAP = 64 * 1024 * 1024
VMEM_LIMIT = int(min(96 * 1024 * 1024, (_VMEM_CAP * 3) // 4))


def _round_up(x, m):
    return (x + m - 1) // m * m


def _pick_tile(extent, pref, align):
    """Largest power-of-two-ish divisor of `extent` that is <= pref (>= align),
    falling back to the full extent (never a silent huge non-divisor tile)."""
    t = min(pref, extent)
    while t > align and extent % t != 0:
        t //= 2
    return t if extent % t == 0 else extent


# ------------------------------------------------------------------
# Tiled matmul kernel (fused QKV projection and output projection)
# ------------------------------------------------------------------

def _matmul_kernel(x_ref, w_ref, o_ref, acc_ref):
    @pl.when(pl.program_id(2) == 0)
    def _():
        acc_ref[...] = jnp.zeros(acc_ref.shape, jnp.float32)

    acc_ref[...] += jnp.dot(x_ref[...], w_ref[...],
                            preferred_element_type=jnp.float32)

    @pl.when(pl.program_id(2) == pl.num_programs(2) - 1)
    def _():
        o_ref[...] = acc_ref[...].astype(o_ref.dtype)


def matmul(x2d, wt, *, tm=512, tn=512, tk=512):
    """y = x2d @ wt, wt pre-transposed to (K, N).  bf16 operands, f32 accum."""
    M, K = x2d.shape
    N = wt.shape[1]
    tm = _pick_tile(M, tm, 16)     # sublane alignment (bf16 packs 16 rows/vreg)
    tn = _pick_tile(N, tn, 128)    # lane alignment
    tk = _pick_tile(K, tk, 128)
    grid = (M // tm, N // tn, K // tk)
    return pl.pallas_call(
        _matmul_kernel,
        out_shape=jax.ShapeDtypeStruct((M, N), x2d.dtype),
        grid_spec=pltpu.PrefetchScalarGridSpec(
            num_scalar_prefetch=0,
            grid=grid,
            in_specs=[
                pl.BlockSpec((tm, tk), lambda i, j, k: (i, k)),
                pl.BlockSpec((tk, tn), lambda i, j, k: (k, j)),
            ],
            out_specs=pl.BlockSpec((tm, tn), lambda i, j, k: (i, j)),
            scratch_shapes=[pltpu.VMEM((tm, tn), jnp.float32)],
        ),
        compiler_params=pltpu.CompilerParams(
            dimension_semantics=("parallel", "parallel", "arbitrary"),
            vmem_limit_bytes=VMEM_LIMIT),
    )(x2d, wt)


# ------------------------------------------------------------------
# Flash attention kernel: resident K/V per (b, h), fused rotate-half rotary,
# online softmax, in-kernel KV loop.  Reads q/k/v straight from the fused
# qkv buffer; writes output in (B*S, H*D) layout.
# ------------------------------------------------------------------

def _flash_kernel(q_ref, k_ref, v_ref, cos_ref, sin_ref, mask_ref, o_ref, *, tkv):
    tq, D = q_ref.shape           # q block  : (tq, D)      bf16
    s_pad = k_ref.shape[0]        # k/v block: (S_pad, D)   bf16, resident per (b,h)
    nkv = s_pad // tkv
    cdtype = k_ref.dtype

    qi = pl.program_id(2)
    q_start = pl.multiple_of(qi * tq, tq)

    # Rotate q once per tile (rotate-half: weights were pre-permuted per head).
    q = q_ref[...].astype(jnp.float32)
    cos_q = cos_ref[pl.ds(q_start, tq), :]
    sin_q = sin_ref[pl.ds(q_start, tq), :]
    q_rot = (q * cos_q + pltpu.roll(q, shift=D // 2, axis=1) * sin_q).astype(cdtype)

    def body(i, carry):
        m_prev, l_prev, acc_prev = carry
        k_start = pl.multiple_of(i * tkv, tkv)

        k = k_ref[pl.ds(k_start, tkv), :].astype(jnp.float32)
        cos_k = cos_ref[pl.ds(k_start, tkv), :]
        sin_k = sin_ref[pl.ds(k_start, tkv), :]
        k_rot = (k * cos_k + pltpu.roll(k, shift=D // 2, axis=1) * sin_k).astype(cdtype)
        v = v_ref[pl.ds(k_start, tkv), :]

        # scores (tq, tkv): contract on last dims -> no explicit transpose.
        s = lax.dot_general(q_rot, k_rot, (((1,), (1,)), ((), ())),
                            preferred_element_type=jnp.float32)
        s = s + mask_ref[0, :, pl.ds(k_start, tkv)]          # (1, tkv) broadcast

        m_new = jnp.maximum(m_prev, jnp.max(s, axis=-1, keepdims=True))
        alpha = jnp.exp(m_prev - m_new)
        p = jnp.exp(s - m_new)                               # (tq, tkv) f32
        l_new = alpha * l_prev + jnp.sum(p, axis=-1, keepdims=True)
        acc_new = alpha * acc_prev + jnp.dot(p.astype(cdtype), v,
                                             preferred_element_type=jnp.float32)
        return m_new, l_new, acc_new

    m0 = jnp.full((tq, 1), -1e30, jnp.float32)
    l0 = jnp.zeros((tq, 1), jnp.float32)
    acc0 = jnp.zeros((tq, D), jnp.float32)
    _, l, acc = lax.fori_loop(0, nkv, body, (m0, l0, acc0), unroll=bool(nkv <= 8))

    # eval-mode dropout == identity
    o_ref[...] = (acc * pl.reciprocal(l, approx=True)).astype(o_ref.dtype)


def flash_attention(qkv, cos_full, sin_signed, mask3, *, n_heads, head_dim, tq, tkv):
    """qkv: (B*S_pad, 3*dim) bf16 fused projection output.
    cos_full/sin_signed: (S_pad, D) f32 rotate-half tables.
    mask3: (B, 1, S_pad) f32 additive key mask.  Returns (B*S_pad, dim) bf16."""
    M, three_dim = qkv.shape
    dim = three_dim // 3
    H, D = n_heads, head_dim
    B, _, s_pad = mask3.shape
    nq = s_pad // tq
    kern = functools.partial(_flash_kernel, tkv=tkv)
    grid = (B, H, nq)
    return pl.pallas_call(
        kern,
        out_shape=jax.ShapeDtypeStruct((M, dim), qkv.dtype),
        grid_spec=pltpu.PrefetchScalarGridSpec(
            num_scalar_prefetch=0,
            grid=grid,
            in_specs=[
                # q tile of head h, read directly from the qkv buffer.
                pl.BlockSpec((tq, D), lambda b, h, qi: (b * nq + qi, h)),
                # K / V: full-S blocks, index map independent of qi -> DMA'd
                # once per (b, h) and kept resident across all query tiles.
                pl.BlockSpec((s_pad, D), lambda b, h, qi: (b, H + h)),
                pl.BlockSpec((s_pad, D), lambda b, h, qi: (b, 2 * H + h)),
                # rotary tables: resident for the whole grid.
                pl.BlockSpec((s_pad, D), lambda b, h, qi: (0, 0)),
                pl.BlockSpec((s_pad, D), lambda b, h, qi: (0, 0)),
                # additive key mask: resident per batch.
                pl.BlockSpec((1, 1, s_pad), lambda b, h, qi: (b, 0, 0)),
            ],
            out_specs=pl.BlockSpec((tq, D), lambda b, h, qi: (b * nq + qi, h)),
        ),
        compiler_params=pltpu.CompilerParams(
            dimension_semantics=("parallel", "parallel", "parallel"),
            vmem_limit_bytes=VMEM_LIMIT),
    )(qkv, qkv, qkv, cos_full, sin_signed, mask3)


# ------------------------------------------------------------------
# Weight preparation (one-time, at setup)
# ------------------------------------------------------------------

def prepare_weights(wq, wk, wv, wo, n_heads, dtype=jnp.bfloat16):
    """Permute wq/wk output rows per head to the de-interleaved order (so the
    in-kernel rotate-half rotation equals the interleaved/complex rotation),
    fold 1/sqrt(head_dim) into wq, fuse into one (dim, 3*dim) matrix, cast bf16."""
    dim = wq.shape[0]
    D = dim // n_heads
    perm = jnp.concatenate([jnp.arange(0, D, 2), jnp.arange(1, D, 2)])
    perm_full = (jnp.arange(n_heads)[:, None] * D + perm[None, :]).reshape(-1)
    scale = 1.0 / math.sqrt(D)
    wq_p = wq[perm_full, :] * scale
    wk_p = wk[perm_full, :]
    w_qkv_t = jnp.concatenate([wq_p.T, wk_p.T, wv.T], axis=1).astype(dtype)  # (dim, 3*dim)
    wo_t = wo.T.astype(dtype)                                                # (dim, dim)
    return w_qkv_t, wo_t


# ------------------------------------------------------------------
# Forward pass (all heavy lifting in the two Pallas kernels)
# ------------------------------------------------------------------

def attention_forward(w_qkv_t, wo_t, x, cos, sin, mask2d, n_heads,
                      *, compute_dtype=jnp.bfloat16, tq_pref=128, tkv_pref=256):
    """x: (B, S, dim); cos/sin: (S, head_dim//2); mask2d: (B, S) additive key mask."""
    B, S, dim = x.shape
    D = dim // n_heads
    assert tkv_pref % tq_pref == 0

    # Sequence tiling: pad to the tile multiple (never fall back to (S,S) tiles).
    align = 16  # bf16 sublane packing
    if S <= tq_pref:
        tq = tkv = _round_up(S, align)
        s_pad = tq
    else:
        tq, tkv = tq_pref, tkv_pref
        s_pad = _round_up(S, tkv)

    pad = s_pad - S
    if pad:
        x = jnp.pad(x, ((0, 0), (0, pad), (0, 0)))
        mask2d = jnp.pad(mask2d, ((0, 0), (0, pad)), constant_values=-1e9)
        cos = jnp.pad(cos, ((0, pad), (0, 0)), constant_values=1.0)
        sin = jnp.pad(sin, ((0, pad), (0, 0)), constant_values=0.0)

    # Rotate-half tables at full head width (q/k come out de-interleaved from
    # the permuted weights): out = u * cos_full + roll(u, D/2) * sin_signed.
    cos_full = jnp.concatenate([cos, cos], axis=1).astype(jnp.float32)        # (s_pad, D)
    sin_signed = jnp.concatenate([-sin, sin], axis=1).astype(jnp.float32)     # (s_pad, D)
    mask3 = mask2d.reshape(B, 1, s_pad).astype(jnp.float32)

    x2d = x.reshape(B * s_pad, dim).astype(compute_dtype)
    qkv = matmul(x2d, w_qkv_t)                           # (B*s_pad, 3*dim) fused projection
    attn = flash_attention(qkv, cos_full, sin_signed, mask3,
                           n_heads=n_heads, head_dim=D, tq=tq, tkv=tkv)
    y = matmul(attn, wo_t)                               # (B*s_pad, dim)
    return y.reshape(B, s_pad, dim)[:, :S, :]


# ------------------------------------------------------------------
# Pure-JAX reference (PyTorch semantics: interleaved/complex rotary)
# ------------------------------------------------------------------

def apply_rotary_interleaved(x, cos, sin):
    B, S, H, D = x.shape
    xr = x.astype(jnp.float32).reshape(B, S, H, D // 2, 2)
    x_re, x_im = xr[..., 0], xr[..., 1]
    c = cos[None, :, None, :]
    s = sin[None, :, None, :]
    out = jnp.stack([x_re * c - x_im * s, x_re * s + x_im * c], axis=-1)
    return out.reshape(B, S, H, D)


def reference_forward(params, x, cos, sin, mask2d, n_heads):
    B, S, dim = x.shape
    head_dim = dim // n_heads
    xq = (x @ params["wq"].T).reshape(B, S, n_heads, head_dim)
    xk = (x @ params["wk"].T).reshape(B, S, n_heads, head_dim)
    xv = (x @ params["wv"].T).reshape(B, S, n_heads, head_dim)
    xq = apply_rotary_interleaved(xq, cos, sin)
    xk = apply_rotary_interleaved(xk, cos, sin)
    q = jnp.transpose(xq, (0, 2, 1, 3))
    k = jnp.transpose(xk, (0, 2, 1, 3))
    v = jnp.transpose(xv, (0, 2, 1, 3))
    scores = jnp.einsum("bhqd,bhkd->bhqk", q, k) / math.sqrt(head_dim)
    scores = scores + mask2d[:, None, None, :]
    probs = jax.nn.softmax(scores.astype(jnp.float32), axis=-1)
    out = jnp.einsum("bhqk,bhkd->bhqd", probs, v)
    out = jnp.transpose(out, (0, 2, 1, 3)).reshape(B, S, dim)
    return out @ params["wo"].T


# ------------------------------------------------------------------
# Main
# ------------------------------------------------------------------

if __name__ == "__main__":
    # Small shapes, but with the real LLaMA head_dim (=128) so blocks are
    # lane-dense (128-lane last dim), as in the reference ModelArgs.
    batch = 2
    seq_len = 8
    n_heads = 2
    head_dim = 128
    dim = n_heads * head_dim   # 256

    key = jax.random.PRNGKey(0)
    kx, kq, kk, kv, ko = jax.random.split(key, 5)
    wscale = 1.0 / math.sqrt(dim)

    params = {
        "wq": jax.random.normal(kq, (dim, dim), jnp.float32) * wscale,
        "wk": jax.random.normal(kk, (dim, dim), jnp.float32) * wscale,
        "wv": jax.random.normal(kv, (dim, dim), jnp.float32) * wscale,
        "wo": jax.random.normal(ko, (dim, dim), jnp.float32) * wscale,
    }
    x = jax.random.normal(kx, (batch, seq_len, dim), jnp.float32)

    # LLaMA-style rotary frequencies.
    inv_freq = 1.0 / (10000.0 ** (jnp.arange(0, head_dim, 2, dtype=jnp.float32) / head_dim))
    t = jnp.arange(seq_len, dtype=jnp.float32)
    angles = jnp.outer(t, inv_freq)          # (S, head_dim//2)
    cos, sin = jnp.cos(angles), jnp.sin(angles)

    # Additive key-padding mask (B, S): batch 1 has its last key masked out.
    mask2d = jnp.zeros((batch, seq_len), jnp.float32).at[1, -1].set(-1e9)

    # One-time weight prep: permute (rotate-half), fold 1/sqrt(D), fuse, bf16.
    w_qkv_t, wo_t = prepare_weights(params["wq"], params["wk"], params["wv"],
                                    params["wo"], n_heads)

    y = attention_forward(w_qkv_t, wo_t, x, cos, sin, mask2d, n_heads)
    y = jax.block_until_ready(y)

    # Reference in f32 on the same bf16-rounded weights/inputs (isolates kernel
    # logic from bf16 quantization noise).
    params_r = {k: v.astype(jnp.bfloat16).astype(jnp.float32) for k, v in params.items()}
    x_r = x.astype(jnp.bfloat16).astype(jnp.float32)
    y_ref = reference_forward(params_r, x_r, cos, sin, mask2d, n_heads)

    assert y.shape == (batch, seq_len, dim)
    y_f32 = y.astype(jnp.float32)
    max_err = float(jnp.max(jnp.abs(y_f32 - y_ref)))
    assert jnp.allclose(y_f32, y_ref, atol=5e-2, rtol=5e-2), (
        f"mismatch vs reference, max_abs_err={max_err}")

    print("KERNEL_OK")
</pallas_src>

<mosaic_0001>
module attributes {stable_mosaic.version = 11 : i64} {
  func.func @_matmul_kernel(%arg0: i32, %arg1: i32, %arg2: i32, %arg3: memref<32x256xbf16, #tpu.memory_space<vmem>>, %arg4: memref<256x256xbf16, #tpu.memory_space<vmem>>, %arg5: memref<32x256xbf16, #tpu.memory_space<vmem>>, %arg6: memref<32x256xf32, #tpu.memory_space<vmem>>) attributes {dimension_semantics = [#tpu.dimension_semantics<parallel>, #tpu.dimension_semantics<parallel>, #tpu.dimension_semantics<arbitrary>], iteration_bounds = array<i64: 1, 3, 1>, scalar_prefetch = 0 : i64, scratch_operands = 1 : i64, tpu.core_type = #tpu.core_type<tc>, window_params = [{transform_indices = @transform_0, window_bounds = array<i64: 32, 256>}, {transform_indices = @transform_1, window_bounds = array<i64: 256, 256>}, {transform_indices = @transform_2, window_bounds = array<i64: 32, 256>}]} {
    %c0_i32 = arith.constant 0 : i32
    %0 = arith.cmpi eq, %arg2, %c0_i32 : i32
    %1 = arith.extui %0 : i1 to i32
    %c0_i32_0 = arith.constant 0 : i32
    %2 = arith.cmpi ne, %1, %c0_i32_0 : i32
    scf.if %2 {
      %cst_10 = arith.constant 0.000000e+00 : f32
      %12 = vector.broadcast %cst_10 : f32 to vector<32x256xf32>
      %c0_11 = arith.constant 0 : index
      %c0_12 = arith.constant 0 : index
      %13 = vector.load %arg6[%c0_11, %c0_12] : memref<32x256xf32, #tpu.memory_space<vmem>>, vector<32x256xf32>
      tpu.vector_store %arg6[%c0_11, %c0_12], %12 {strides = array<i32>} : memref<32x256xf32, #tpu.memory_space<vmem>>, vector<32x256xf32>,
    } else {
    }
    %c0 = arith.constant 0 : index
    %c0_1 = arith.constant 0 : index
    %3 = vector.load %arg6[%c0, %c0_1] : memref<32x256xf32, #tpu.memory_space<vmem>>, vector<32x256xf32>
    %c0_2 = arith.constant 0 : index
    %c0_3 = arith.constant 0 : index
    %4 = vector.load %arg3[%c0_2, %c0_3] : memref<32x256xbf16, #tpu.memory_space<vmem>>, vector<32x256xbf16>
    %c0_4 = arith.constant 0 : index
    %c0_5 = arith.constant 0 : index
    %5 = vector.load %arg4[%c0_4, %c0_5] : memref<256x256xbf16, #tpu.memory_space<vmem>>, vector<256x256xbf16>
    %cst = arith.constant dense<0.000000e+00> : vector<32x256xf32>
    %6 = tpu.matmul %4, %5, %cst {dimension_numbers = #tpu.dot_dimension_numbers<[1], [0], [0], [1], [0, 0, 1, 1], [], []>} : vector<32x256xbf16>, vector<256x256xbf16>, vector<32x256xf32> -> vector<32x256xf32>
    %7 = arith.addf %3, %6 : vector<32x256xf32>
    %c0_6 = arith.constant 0 : index
    %c0_7 = arith.constant 0 : index
    %8 = vector.load %arg6[%c0_6, %c0_7] : memref<32x256xf32, #tpu.memory_space<vmem>>, vector<32x256xf32>
    tpu.vector_store %arg6[%c0_6, %c0_7], %7 {strides = array<i32>} : memref<32x256xf32, #tpu.memory_space<vmem>>, vector<32x256xf32>,
    %c0_i32_8 = arith.constant 0 : i32
    %9 = arith.cmpi eq, %arg2, %c0_i32_8 : i32
    %10 = arith.extui %9 : i1 to i32
    %c0_i32_9 = arith.constant 0 : i32
    %11 = arith.cmpi ne, %10, %c0_i32_9 : i32
    scf.if %11 {
      %c0_10 = arith.constant 0 : index
      %c0_11 = arith.constant 0 : index
      %12 = vector.load %arg6[%c0_10, %c0_11] : memref<32x256xf32, #tpu.memory_space<vmem>>, vector<32x256xf32>
      %13 = arith.truncf %12 : vector<32x256xf32> to vector<32x256xbf16>
      %c0_12 = arith.constant 0 : index
      %c0_13 = arith.constant 0 : index
      %14 = vector.load %arg5[%c0_12, %c0_13] : memref<32x256xbf16, #tpu.memory_space<vmem>>, vector<32x256xbf16>
      tpu.vector_store %arg5[%c0_12, %c0_13], %13 {strides = array<i32>} : memref<32x256xbf16, #tpu.memory_space<vmem>>, vector<32x256xbf16>,
    } else {
    }
    return
  }
  func.func @transform_0(%arg0: i32, %arg1: i32, %arg2: i32) -> (i32, i32) {
    %c0_i32 = arith.constant 0 : i32
    return %arg0, %arg2 : i32, i32
  }
  func.func @transform_1(%arg0: i32, %arg1: i32, %arg2: i32) -> (i32, i32) {
    %c0_i32 = arith.constant 0 : i32
    return %arg2, %arg1 : i32, i32
  }
  func.func @transform_2(%arg0: i32, %arg1: i32, %arg2: i32) -> (i32, i32) {
    %c0_i32 = arith.constant 0 : i32
    return %arg0, %arg1 : i32, i32
  }
}

</mosaic_0001>

<llo_original>
// kernel: tpu_custom_call.1
$region0: #{tpu_custom_call.1}
  #allocation0 [shape = 'u32[]', space=smem, size = 0x4, offset = 0x4, fixed_abs, tag = 'smem constant byte address 0x4 - core index']
  #allocation1 [shape = 'u32[144,128]{1,0:T(1,128)}', space=vmem, size = 0x12000, scoped, tag = 'internal scratch']
  #allocation2 [shape = 'f32[32,256]{1,0:T(8,128)}', space=vmem, size = 0x8000, scoped, tag = 'scratch operand']
  %s0 = inlined_call_operand.hbm [shape: bf16[32,256], index: 0, kind: input, shape index: {}]
  %s1 = inlined_call_operand.hbm [shape: bf16[256,768], index: 1, kind: input, shape index: {}]
  %s2 = inlined_call_operand.hbm [shape: bf16[32,768], index: 2, kind: output, shape index: {}]
  %s3 = sld [smem:[#allocation0]]
  $region57: #{tpu_custom_call.1} parent=0
    _
  %s5 = ssub.s32 1, %s3
  %s6 = scalar_select 0, %s5, %s3
  $region1: #{tpu_custom_call.1} parent=0
    #allocation3 [shape = 'u8[16384]{0}', space=vmem, size = 0x4000, scoped, tag = 'input window, operand 0, single buffered']
    #allocation4 [shape = 's32[2]{0}', space=sflag, size = 0x8, scoped, tag = 'scoped memory for tpu_custom_call.1']
    #allocation5 [shape = 's32[2]{0}', space=sflag, size = 0x8, scoped, tag = 'scoped memory for tpu_custom_call.1']
    #allocation6 [shape = 'u8[262144]{0}', space=vmem, size = 0x40000, scoped, tag = 'input window, operand 1']
    #allocation7 [shape = 's32[2]{0}', space=sflag, size = 0x8, scoped, tag = 'scoped memory for tpu_custom_call.1']
    #allocation8 [shape = 'u8[32768]{0}', space=vmem, size = 0x8000, scoped, tag = 'output window, operand 0']
    %7 = vsyncpa [#allocation4], 0
    %8 = vsyncpa [#allocation7], 0
    %s9 = scalar_lea.sflag [#allocation7], 1
    %10 = vsyncpa %s9, 0
    %11 = vsyncpa [#allocation5], 0
    %s12 = scalar_lea.sflag [#allocation5], 1
    %13 = vsyncpa %s12, 0
    loop: start=0, step=1, limit=5
    $region2: #{tpu_custom_call.1} parent=1 // loop_pre_header
      _
    $region3: #{tpu_custom_call.1} parent=1 // loop_header
      %s15 = sphi 0, %s19
      %p16 = scmp.ge.s32.totalorder %s15, 5
      %s22 = sphi 0, %s41
      %s23 = sphi 0, %s37
      %s24 = sphi 0, %s33
      %s25 = sphi 0, %s22
      %s26 = sphi 0, %s23
      %s27 = sphi 0, %s24
      %s28 = sphi 0, %s25
      %s29 = sphi 0, %s26
      %s30 = sphi 0, %s27
      %s46 = sphi 0, %s48
      %s49 = sphi 0, %s46
      %s50 = sphi 0, %s49
      %s66 = sphi 0, %s50
      %s74 = sphi 0, %s76
      %s77 = sphi 0, %s74
      %s78 = sphi 0, %s77
      %s94 = sphi 0, %s78
      %s102 = sphi 0, %s104
      %s105 = sphi 0, %s102
      %s106 = sphi 0, %s105
      %s122 = sphi 0, %s106
    $region4: #{tpu_custom_call.1} parent=1 // loop_header_branch
      %18 = sbr.rel (%p16) target = $region8
    $region5: #{tpu_custom_call.1} parent=1 // loop_body
      %s20 = ssub.s32 %s15, 1
      %s21 = ssub.s32 %s15, 2
      %s31 = sadd.s32 1, %s24
      %p32 = scmp.ge.s32.totalorder %s31, 1
      %s33 = scalar_select %p32, 0, %s31
      %s34 = sadd.s32 1, %s23
      %s35 = scalar_select %p32, %s34, %s23
      %p36 = scmp.ge.s32.totalorder %s35, 3
      %s37 = scalar_select %p36, 0, %s35
      %s38 = sadd.s32 1, %s22
      %s39 = scalar_select %p36, %s38, %s22
      %p40 = scmp.ge.s32.totalorder %s39, 1
      %s41 = scalar_select %p40, 0, %s39
      %s42 = ssub.s32 %s22, %s41
      %s43 = ssub.s32 %s24, %s33
      %s44 = sor.u32 %s42, %s43
      %p45 = scmp.eq.s32.totalorder %s44, 0
      %s47 = sadd.s32 %s46, 1
      %s48 = scalar_select %p45, %s46, %s47
      %p51 = pneg %p45
      %p52 = scmp.eq.s32.totalorder %s15, 2
      %p53 = por %p51, %p52
      %p54 = scmp.ne.s32.totalorder %s46, %s49
      %p55 = scmp.eq.s32.totalorder %s15, 0
      %p56 = por %p54, %p55
      %p57 = scmp.ne.s32.totalorder %s46, %s49
      %p58 = scmp.eq.s32.totalorder %s20, 2
      %p59 = por %p57, %p58
      %p60 = scmp.ne.s32.totalorder %s49, %s50
      %p61 = scmp.eq.s32.totalorder %s20, 0
      %p62 = por %p60, %p61
      %p63 = scmp.ne.s32.totalorder %s49, %s50
      %p64 = scmp.eq.s32.totalorder %s21, 2
      %p65 = por %p63, %p64
      %p67 = scmp.ne.s32.totalorder %s50, %s66
      %p68 = scmp.eq.s32.totalorder %s21, 0
      %p69 = por %p67, %p68
      %s70 = ssub.s32 %s24, %s33
      %s71 = ssub.s32 %s23, %s37
      %s72 = sor.u32 %s70, %s71
      %p73 = scmp.eq.s32.totalorder %s72, 0
      %s75 = sadd.s32 %s74, 1
      %s76 = scalar_select %p73, %s74, %s75
      %p79 = pneg %p73
      %p80 = scmp.eq.s32.totalorder %s15, 2
      %p81 = por %p79, %p80
      %p82 = scmp.ne.s32.totalorder %s74, %s77
      %p83 = scmp.eq.s32.totalorder %s15, 0
      %p84 = por %p82, %p83
      %p85 = scmp.ne.s32.totalorder %s74, %s77
      %p86 = scmp.eq.s32.totalorder %s20, 2
      %p87 = por %p85, %p86
      %p88 = scmp.ne.s32.totalorder %s77, %s78
      %p89 = scmp.eq.s32.totalorder %s20, 0
      %p90 = por %p88, %p89
      %p91 = scmp.ne.s32.totalorder %s77, %s78
      %p92 = scmp.eq.s32.totalorder %s21, 2
      %p93 = por %p91, %p92
      %p95 = scmp.ne.s32.totalorder %s78, %s94
      %p96 = scmp.eq.s32.totalorder %s21, 0
      %p97 = por %p95, %p96
      %s98 = ssub.s32 %s22, %s41
      %s99 = ssub.s32 %s23, %s37
      %s100 = sor.u32 %s98, %s99
      %p101 = scmp.eq.s32.totalorder %s100, 0
      %s103 = sadd.s32 %s102, 1
      %s104 = scalar_select %p101, %s102, %s103
      %p107 = pneg %p101
      %p108 = scmp.eq.s32.totalorder %s15, 2
      %p109 = por %p107, %p108
      %p110 = scmp.ne.s32.totalorder %s102, %s105
      %p111 = scmp.eq.s32.totalorder %s15, 0
      %p112 = por %p110, %p111
      %p113 = scmp.ne.s32.totalorder %s102, %s105
      %p114 = scmp.eq.s32.totalorder %s20, 2
      %p115 = por %p113, %p114
      %p116 = scmp.ne.s32.totalorder %s105, %s106
      %p117 = scmp.eq.s32.totalorder %s20, 0
      %p118 = por %p116, %p117
      %p119 = scmp.ne.s32.totalorder %s105, %s106
      %p120 = scmp.eq.s32.totalorder %s21, 2
      %p121 = por %p119, %p120
      %p123 = scmp.ne.s32.totalorder %s106, %s122
      %p124 = scmp.eq.s32.totalorder %s21, 0
      %p125 = por %p123, %p124
      %p126 = scmp.le.s32.totalorder 1, %s15
      %p127 = scmp.lt.s32.totalorder %s15, 4
      %p128 = pnand %p126, %p127
      %p129 = pneg %p128
      // Predicated region
      $region9: #{tpu_custom_call.1} parent=5 // pred_check
        _
      $region10: #{tpu_custom_call.1} parent=5 // pred_check_branch
        %131 = sbr.rel (%p128) target = $region12
      $region11: #{tpu_custom_call.1} parent=5 // pred_region
        %s132 = ssub.s32 %s15, 1
        // Predicated region
        $region13: #{tpu_custom_call.1} parent=11 // pred_check
          %p133 = pneg %p62
        $region14: #{tpu_custom_call.1} parent=11 // pred_check_branch
          %135 = sbr.rel (%p133) target = $region16
        $region15: #{tpu_custom_call.1} parent=11 // pred_region
          %s136 = smul.u32 4, %s25
          %s137 = smul.u32 2, %s27
          %s139 = ssub.s32 512, 512
          %140 = vsyncadd [#allocation4], %s139
          %s141 = smul.addr %s136, 2
          %s142 = sadd.s32 %s137, %s141
          %s143 = smul.addr %s142, 64
          %s144 = scalar_lea.hbm %s0, %s143
          %s145 = sshll.u32 [#allocation3], 4
          %s146 = int_to_ptr.vmem [resolvable:$true] %s145
          %151 = dma.hbm_to_vmem [thread:$0]  %s144, 512, %s146, [#allocation4], 128, 128, 8
        $region16: #{tpu_custom_call.1} parent=11 // pred_fallthru
          _
      $region12: #{tpu_custom_call.1} parent=5 // pred_fallthru
        _
      %p152 = scmp.lt.s32.totalorder %s15, 3
      // Predicated region
      $region17: #{tpu_custom_call.1} parent=5 // pred_check
        %p153 = pneg %p152
      $region18: #{tpu_custom_call.1} parent=5 // pred_check_branch
        %155 = sbr.rel (%p153) target = $region20
      $region19: #{tpu_custom_call.1} parent=5 // pred_region
        // Predicated region
        $region21: #{tpu_custom_call.1} parent=19 // pred_check
          %p156 = pneg %p84
        $region22: #{tpu_custom_call.1} parent=19 // pred_check_branch
          %158 = sbr.rel (%p156) target = $region24
        $region23: #{tpu_custom_call.1} parent=19 // pred_region
          %s159 = sand.u32 %s74, 1
          %s160 = scalar_lea.sflag [#allocation7], %s159
          %s161 = sand.u32 %s74, 1
          %s162 = smul.addr %s161, 256
          %s163 = scalar_lea.vmem [#allocation6], %s162
          %s164 = smul.u32 32, %s24
          %s165 = smul.u32 2, %s23
          %s167 = ssub.s32 4096, 4096
          %168 = vsyncadd %s160, %s167
          %s169 = smul.addr %s164, 6
          %s170 = sadd.s32 %s165, %s169
          %s171 = smul.addr %s170, 64
          %s172 = scalar_lea.hbm %s1, %s171
          %s173 = sshll.u32 %s163, 4
          %s174 = int_to_ptr.vmem [resolvable:$true] %s173
          %179 = dma.hbm_to_vmem [thread:$0]  %s172, 4096, %s174, %s160, 384, 128, 8
        $region24: #{tpu_custom_call.1} parent=19 // pred_fallthru
          _
      $region20: #{tpu_custom_call.1} parent=5 // pred_fallthru
        _
      %p180 = scmp.le.s32.totalorder 1, %s15
      %p181 = scmp.lt.s32.totalorder %s15, 4
      %p182 = pnand %p180, %p181
      %p183 = pneg %p182
      // Predicated region
      $region25: #{tpu_custom_call.1} parent=5 // pred_check
        _
      $region26: #{tpu_custom_call.1} parent=5 // pred_check_branch
        %185 = sbr.rel (%p182) target = $region28
      $region27: #{tpu_custom_call.1} parent=5 // pred_region
        %s186 = ssub.s32 %s15, 1
        // Predicated region
        $region29: #{tpu_custom_call.1} parent=27 // pred_check
          %p187 = pneg %p62
        $region30: #{tpu_custom_call.1} parent=27 // pred_check_branch
          %189 = sbr.rel (%p187) target = $region32
        $region31: #{tpu_custom_call.1} parent=27 // pred_region
          %190 = dma.done [#allocation4], 512
        $region32: #{tpu_custom_call.1} parent=27 // pred_fallthru
          _
        %s191 = sand.u32 %s77, 1
        %s192 = scalar_lea.sflag [#allocation7], %s191
        %s193 = sand.u32 %s77, 1
        %s194 = smul.addr %s193, 256
        %s195 = scalar_lea.vmem [#allocation6], %s194
        // Predicated region
        $region33: #{tpu_custom_call.1} parent=27 // pred_check
          %p196 = pneg %p90
        $region34: #{tpu_custom_call.1} parent=27 // pred_check_branch
          %198 = sbr.rel (%p196) target = $region36
        $region35: #{tpu_custom_call.1} parent=27 // pred_region
          %199 = dma.done %s192, 4096
        $region36: #{tpu_custom_call.1} parent=27 // pred_fallthru
          _
        %p200 = pneg %p62
        %p201 = pneg %p59
        %s202 = sand.u32 %s77, 1
        %s203 = scalar_lea.sflag [#allocation7], %s202
        %s204 = sand.u32 %s77, 1
        %s205 = smul.addr %s204, 256
        %s206 = scalar_lea.vmem [#allocation6], %s205
        %p207 = pneg %p90
        %p208 = pneg %p87
        %p209 = pneg %p118
        %p210 = pneg %p115
        %s211 = sand.u32 %s105, 1
        %s212 = scalar_lea.sflag [#allocation5], %s211
        %s213 = sand.u32 %s105, 1
        %s214 = smul.addr %s213, 32
        %s215 = scalar_lea.vmem [#allocation8], %s214
        %s216 = smul.u32 4, %s25
        %s217 = smul.u32 2, %s27
        %s218 = smul.u32 32, %s27
        %s219 = smul.u32 2, %s26
        %s220 = smul.u32 4, %s25
        %s221 = smul.u32 2, %s26
        %p222 = scmp.eq.s32.totalorder %s27, 0
        // Predicated region
        $region37: #{tpu_custom_call.1} parent=27 // pred_check
          %p223 = pneg %p222
        $region38: #{tpu_custom_call.1} parent=27 // pred_check_branch
          %225 = sbr.rel (%p223) target = $region40
        $region39: #{tpu_custom_call.1} parent=27 // pred_region
          %226 = vst [vmem:[#allocation2] sm:$0xff] 0.0
          %227 = vst [vmem:[#allocation2 + $0x8] sm:$0xff] 0.0
          %228 = vst [vmem:[#allocation2 + $0x10] sm:$0xff] 0.0
          %229 = vst [vmem:[#allocation2 + $0x18] sm:$0xff] 0.0
          %230 = vst [vmem:[#allocation2 + $0x20] sm:$0xff] 0.0
          %231 = vst [vmem:[#allocation2 + $0x28] sm:$0xff] 0.0
          %232 = vst [vmem:[#allocation2 + $0x30] sm:$0xff] 0.0
          %233 = vst [vmem:[#allocation2 + $0x38] sm:$0xff] 0.0
        $region40: #{tpu_custom_call.1} parent=27 // pred_fallthru
          _
        %v234 = vld [vmem:[#allocation2] sm:$0xff]
        %v235 = vld [vmem:[#allocation2 + $0x8] sm:$0xff]
        %v236 = vld [vmem:[#allocation2 + $0x10] sm:$0xff]
        %v237 = vld [vmem:[#allocation2 + $0x18] sm:$0xff]
        %v238 = vld [vmem:[#allocation2 + $0x20] sm:$0xff]
        %v239 = vld [vmem:[#allocation2 + $0x28] sm:$0xff]
        %v240 = vld [vmem:[#allocation2 + $0x30] sm:$0xff]
        %v241 = vld [vmem:[#allocation2 + $0x38] sm:$0xff]
        %v242 = vld [vmem:[#allocation3] sm:$0xff]
        %v243 = vld [vmem:[#allocation3 + $0x8] sm:$0xff]
        %v244 = vld [vmem:[#allocation3 + $0x10] sm:$0xff]
        %v245 = vld [vmem:[#allocation3 + $0x18] sm:$0xff]
        %v246 = vld [vmem:[%s195] sm:$0xff]
        %v247 = vld [vmem:[%s195 + $0x8] sm:$0xff]
        %v248 = vld [vmem:[%s195 + $0x10] sm:$0xff]
        %v249 = vld [vmem:[%s195 + $0x18] sm:$0xff]
        %v250 = vld [vmem:[%s195 + $0x20] sm:$0xff]
        %v251 = vld [vmem:[%s195 + $0x28] sm:$0xff]
        %v252 = vld [vmem:[%s195 + $0x30] sm:$0xff]
        %v253 = vld [vmem:[%s195 + $0x38] sm:$0xff]
        %v254 = vld [vmem:[%s195 + $0x40] sm:$0xff]
        %v255 = vld [vmem:[%s195 + $0x48] sm:$0xff]
        %v256 = vld [vmem:[%s195 + $0x50] sm:$0xff]
        %v257 = vld [vmem:[%s195 + $0x58] sm:$0xff]
        %v258 = vld [vmem:[%s195 + $0x60] sm:$0xff]
        %v259 = vld [vmem:[%s195 + $0x68] sm:$0xff]
        %v260 = vld [vmem:[%s195 + $0x70] sm:$0xff]
        %v261 = vld [vmem:[%s195 + $0x78] sm:$0xff]
        %v262 = vld [vmem:[%s195 + $0x80] sm:$0xff]
        %v263 = vld [vmem:[%s195 + $0x88] sm:$0xff]
        %v264 = vld [vmem:[%s195 + $0x90] sm:$0xff]
        %v265 = vld [vmem:[%s195 + $0x98] sm:$0xff]
        %v266 = vld [vmem:[%s195 + $0xa0] sm:$0xff]
        %v267 = vld [vmem:[%s195 + $0xa8] sm:$0xff]
        %v268 = vld [vmem:[%s195 + $0xb0] sm:$0xff]
        %v269 = vld [vmem:[%s195 + $0xb8] sm:$0xff]
        %v270 = vld [vmem:[%s195 + $0xc0] sm:$0xff]
        %v271 = vld [vmem:[%s195 + $0xc8] sm:$0xff]
        %v272 = vld [vmem:[%s195 + $0xd0] sm:$0xff]
        %v273 = vld [vmem:[%s195 + $0xd8] sm:$0xff]
        %v274 = vld [vmem:[%s195 + $0xe0] sm:$0xff]
        %v275 = vld [vmem:[%s195 + $0xe8] sm:$0xff]
        %v276 = vld [vmem:[%s195 + $0xf0] sm:$0xff]
        %v277 = vld [vmem:[%s195 + $0xf8] sm:$0xff]
        %v282 = vunpack.c.l.b16 %v242
        %v283 = vunpack.c.h.b16 %v242
        %v284 = vunpack.c.l.b16 %v243
        %v285 = vunpack.c.h.b16 %v243
        %v286 = vunpack.c.l.b16 %v244
        %v287 = vunpack.c.h.b16 %v244
        %v288 = vunpack.c.l.b16 %v245
        %v289 = vunpack.c.h.b16 %v245
        %v290 = vpack.c.b16 %v284, %v282
        %v291 = vpack.c.b16 %v285, %v283
        %v292 = vpack.c.b16 %v288, %v286
        %v293 = vpack.c.b16 %v289, %v287
        %v330 = vunpack.c.l.b16 %v246
        %v331 = vunpack.c.h.b16 %v246
        %v332 = vunpack.c.l.b16 %v247
        %v333 = vunpack.c.h.b16 %v247
        %v334 = vunpack.c.l.b16 %v248
        %v335 = vunpack.c.h.b16 %v248
        %v336 = vunpack.c.l.b16 %v249
        %v337 = vunpack.c.h.b16 %v249
        %v338 = vunpack.c.l.b16 %v250
        %v339 = vunpack.c.h.b16 %v250
        %v340 = vunpack.c.l.b16 %v251
        %v341 = vunpack.c.h.b16 %v251
        %v342 = vunpack.c.l.b16 %v252
        %v343 = vunpack.c.h.b16 %v252
        %v344 = vunpack.c.l.b16 %v253
        %v345 = vunpack.c.h.b16 %v253
        %v346 = vunpack.c.l.b16 %v254
        %v347 = vunpack.c.h.b16 %v254
        %v348 = vunpack.c.l.b16 %v255
        %v349 = vunpack.c.h.b16 %v255
        %v350 = vunpack.c.l.b16 %v256
        %v351 = vunpack.c.h.b16 %v256
        %v352 = vunpack.c.l.b16 %v257
        %v353 = vunpack.c.h.b16 %v257
        %v354 = vunpack.c.l.b16 %v258
        %v355 = vunpack.c.h.b16 %v258
        %v356 = vunpack.c.l.b16 %v259
        %v357 = vunpack.c.h.b16 %v259
        %v358 = vunpack.c.l.b16 %v260
        %v359 = vunpack.c.h.b16 %v260
        %v360 = vunpack.c.l.b16 %v261
        %v361 = vunpack.c.h.b16 %v261
        %v362 = vunpack.c.l.b16 %v262
        %v363 = vunpack.c.h.b16 %v262
        %v364 = vunpack.c.l.b16 %v263
        %v365 = vunpack.c.h.b16 %v263
        %v366 = vunpack.c.l.b16 %v264
        %v367 = vunpack.c.h.b16 %v264
        %v368 = vunpack.c.l.b16 %v265
        %v369 = vunpack.c.h.b16 %v265
        %v370 = vunpack.c.l.b16 %v266
        %v371 = vunpack.c.h.b16 %v266
        %v372 = vunpack.c.l.b16 %v267
        %v373 = vunpack.c.h.b16 %v267
        %v374 = vunpack.c.l.b16 %v268
        %v375 = vunpack.c.h.b16 %v268
        %v376 = vunpack.c.l.b16 %v269
        %v377 = vunpack.c.h.b16 %v269
        %v378 = vunpack.c.l.b16 %v270
        %v379 = vunpack.c.h.b16 %v270
        %v380 = vunpack.c.l.b16 %v271
        %v381 = vunpack.c.h.b16 %v271
        %v382 = vunpack.c.l.b16 %v272
        %v383 = vunpack.c.h.b16 %v272
        %v384 = vunpack.c.l.b16 %v273
        %v385 = vunpack.c.h.b16 %v273
        %v386 = vunpack.c.l.b16 %v274
        %v387 = vunpack.c.h.b16 %v274
        %v388 = vunpack.c.l.b16 %v275
        %v389 = vunpack.c.h.b16 %v275
        %v390 = vunpack.c.l.b16 %v276
        %v391 = vunpack.c.h.b16 %v276
        %v392 = vunpack.c.l.b16 %v277
        %v393 = vunpack.c.h.b16 %v277
        %v394 = vpack.c.b16 %v332, %v330
        %v395 = vpack.c.b16 %v333, %v331
        %v396 = vpack.c.b16 %v336, %v334
        %v397 = vpack.c.b16 %v337, %v335
        %v398 = vpack.c.b16 %v340, %v338
        %v399 = vpack.c.b16 %v341, %v339
        %v400 = vpack.c.b16 %v344, %v342
        %v401 = vpack.c.b16 %v345, %v343
        %v402 = vpack.c.b16 %v348, %v346
        %v403 = vpack.c.b16 %v349, %v347
        %v404 = vpack.c.b16 %v352, %v350
        %v405 = vpack.c.b16 %v353, %v351
        %v406 = vpack.c.b16 %v356, %v354
        %v407 = vpack.c.b16 %v357, %v355
        %v408 = vpack.c.b16 %v360, %v358
        %v409 = vpack.c.b16 %v361, %v359
        %v410 = vpack.c.b16 %v364, %v362
        %v411 = vpack.c.b16 %v365, %v363
        %v412 = vpack.c.b16 %v368, %v366
        %v413 = vpack.c.b16 %v369, %v367
        %v414 = vpack.c.b16 %v372, %v370
        %v415 = vpack.c.b16 %v373, %v371
        %v416 = vpack.c.b16 %v376, %v374
        %v417 = vpack.c.b16 %v377, %v375
        %v418 = vpack.c.b16 %v380, %v378
        %v419 = vpack.c.b16 %v381, %v379
        %v420 = vpack.c.b16 %v384, %v382
        %v421 = vpack.c.b16 %v385, %v383
        %v422 = vpack.c.b16 %v388, %v386
        %v423 = vpack.c.b16 %v389, %v387
        %v424 = vpack.c.b16 %v392, %v390
        %v425 = vpack.c.b16 %v393, %v391
        %458 = vmatprep.subr.bf16.mxu0 %v409
        %459 = vmatpush1.bf16.msra.mxu0 %v408
        %460 = vmatprep.subr.bf16.mxu0 %v407
        %461 = vmatpush1.bf16.msra.mxu0 %v406
        %462 = vmatprep.subr.bf16.mxu0 %v405
        %463 = vmatpush1.bf16.msra.mxu0 %v404
        %464 = vmatprep.subr.bf16.mxu0 %v403
        %465 = vmatpush1.bf16.msra.mxu0 %v402
        %466 = vmatprep.subr.bf16.mxu0 %v401
        %467 = vmatpush1.bf16.msra.mxu0 %v400
        %468 = vmatprep.subr.bf16.mxu0 %v399
        %469 = vmatpush1.bf16.msra.mxu0 %v398
        %470 = vmatprep.subr.bf16.mxu0 %v397
        %471 = vmatpush1.bf16.msra.mxu0 %v396
        %472 = vmatprep.subr.bf16.mxu0 %v395
        %473 = vmatpush1.bf16.msra.mxu0 %v394
        %474 = vmatprep.subr.bf16.mxu0 %v425
        %475 = vmatpush2.bf16.msra.mxu0 %v424
        %476 = vmatprep.subr.bf16.mxu0 %v423
        %477 = vmatpush2.bf16.msra.mxu0 %v422
        %478 = vmatprep.subr.bf16.mxu0 %v421
        %479 = vmatpush2.bf16.msra.mxu0 %v420
        %480 = vmatprep.subr.bf16.mxu0 %v419
        %481 = vmatpush2.bf16.msra.mxu0 %v418
        %482 = vmatprep.subr.bf16.mxu0 %v417
        %483 = vmatpush2.bf16.msra.mxu0 %v416
        %484 = vmatprep.subr.bf16.mxu0 %v415
        %485 = vmatpush2.bf16.msra.mxu0 %v414
        %486 = vmatprep.subr.bf16.mxu0 %v413
        %487 = vmatpush2.bf16.msra.mxu0 %v412
        %488 = vmatprep.subr.bf16.mxu0 %v411
        %489 = vmatpush2.bf16.msra.mxu0 %v410
        %490 = vmatprep.mubr.bf16.mxu0 %v291
        %491 = vmatmul.mubr.bf16.gmra.mxu0 %v290
        %v492 = vpop.f32.mrf.mxu0
        %v493 = vadd.f32 0.0, %v492
        %v494 = vpop.f32.mrf.mxu0
        %v495 = vadd.f32 0.0, %v494
        %v496 = vpop.f32.mrf.mxu0
        %v497 = vadd.f32 0.0, %v496
        %v498 = vpop.f32.mrf.mxu0
        %v499 = vadd.f32 0.0, %v498
        %500 = vmatprep.mubr.bf16.mxu0 %v293
        %501 = vmatmul.mubr.bf16.gmra.mxu0 %v292
        %v502 = vpop.f32.mrf.mxu0
        %v503 = vadd.f32 0.0, %v502
        %v504 = vpop.f32.mrf.mxu0
        %v505 = vadd.f32 0.0, %v504
        %v506 = vpop.f32.mrf.mxu0
        %v507 = vadd.f32 0.0, %v506
        %v508 = vpop.f32.mrf.mxu0
        %v509 = vadd.f32 0.0, %v508
        %510 = vdwg.mxu0
        %v511 = vadd.f32 %v234, %v493
        %v512 = vadd.f32 %v235, %v495
        %v513 = vadd.f32 %v236, %v497
        %v514 = vadd.f32 %v237, %v499
        %v515 = vadd.f32 %v238, %v503
        %v516 = vadd.f32 %v239, %v505
        %v517 = vadd.f32 %v240, %v507
        %v518 = vadd.f32 %v241, %v509
        %519 = vst [vmem:[#allocation2] sm:$0xff] %v511
        %520 = vst [vmem:[#allocation2 + $0x8] sm:$0xff] %v512
        %521 = vst [vmem:[#allocation2 + $0x10] sm:$0xff] %v513
        %522 = vst [vmem:[#allocation2 + $0x18] sm:$0xff] %v514
        %523 = vst [vmem:[#allocation2 + $0x20] sm:$0xff] %v515
        %524 = vst [vmem:[#allocation2 + $0x28] sm:$0xff] %v516
        %525 = vst [vmem:[#allocation2 + $0x30] sm:$0xff] %v517
        %526 = vst [vmem:[#allocation2 + $0x38] sm:$0xff] %v518
        // Predicated region
        $region41: #{tpu_custom_call.1} parent=27 // pred_check
          %p527 = pneg %p222
        $region42: #{tpu_custom_call.1} parent=27 // pred_check_branch
          %529 = sbr.rel (%p527) target = $region44
        $region43: #{tpu_custom_call.1} parent=27 // pred_region
          %v530 = vld [vmem:[#allocation2] sm:$0xff]
          %v531 = vld [vmem:[#allocation2 + $0x8] sm:$0xff]
          %v532 = vld [vmem:[#allocation2 + $0x10] sm:$0xff]
          %v533 = vld [vmem:[#allocation2 + $0x18] sm:$0xff]
          %v534 = vld [vmem:[#allocation2 + $0x20] sm:$0xff]
          %v535 = vld [vmem:[#allocation2 + $0x28] sm:$0xff]
          %v536 = vld [vmem:[#allocation2 + $0x30] sm:$0xff]
          %v537 = vld [vmem:[#allocation2 + $0x38] sm:$0xff]
          %v538 = vpack.c.bf16 %v532, %v530
          %v539 = vpack.c.bf16 %v533, %v531
          %v540 = vpack.c.bf16 %v536, %v534
          %v541 = vpack.c.bf16 %v537, %v535
          %v546 = vunpack.c.l.b16 %v538
          %v547 = vunpack.c.l.b16 %v539
          %v548 = vunpack.c.h.b16 %v538
          %v549 = vunpack.c.h.b16 %v539
          %v550 = vunpack.c.l.b16 %v540
          %v551 = vunpack.c.l.b16 %v541
          %v552 = vunpack.c.h.b16 %v540
          %v553 = vunpack.c.h.b16 %v541
          %v554 = vpack.c.b16 %v547, %v546
          %v555 = vpack.c.b16 %v549, %v548
          %v556 = vpack.c.b16 %v551, %v550
          %v557 = vpack.c.b16 %v553, %v552
          %562 = vst [vmem:[%s215] sm:$0xff] %v554
          %563 = vst [vmem:[%s215 + $0x8] sm:$0xff] %v555
          %564 = vst [vmem:[%s215 + $0x10] sm:$0xff] %v556
          %565 = vst [vmem:[%s215 + $0x18] sm:$0xff] %v557
        $region44: #{tpu_custom_call.1} parent=27 // pred_fallthru
          _
        %s566 = sand.u32 %s105, 1
        %s567 = scalar_lea.sflag [#allocation5], %s566
        %s568 = sand.u32 %s105, 1
        %s569 = smul.addr %s568, 32
        %s570 = scalar_lea.vmem [#allocation8], %s569
        // Predicated region
        $region45: #{tpu_custom_call.1} parent=27 // pred_check
          %p571 = pneg %p115
        $region46: #{tpu_custom_call.1} parent=27 // pred_check_branch
          %573 = sbr.rel (%p571) target = $region48
        $region47: #{tpu_custom_call.1} parent=27 // pred_region
          %s574 = smul.u32 4, %s25
          %s575 = smul.u32 2, %s26
          %s577 = ssub.s32 512, 512
          %578 = vsyncadd %s567, %s577
          %s579 = smul.addr %s574, 6
          %s580 = sadd.s32 %s575, %s579
          %s581 = smul.addr %s580, 64
          %s582 = scalar_lea.hbm %s2, %s581
          %s583 = sshll.u32 %s570, 4
          %s584 = int_to_ptr.vmem [resolvable:$true] %s583
          %589 = dma.vmem_to_hbm [thread:$0]  %s584, 512, %s582, %s567, 128, 384, 8
        $region48: #{tpu_custom_call.1} parent=27 // pred_fallthru
          _
      $region28: #{tpu_custom_call.1} parent=5 // pred_fallthru
        _
      %p590 = scmp.le.s32.totalorder 2, %s15
      // Predicated region
      $region49: #{tpu_custom_call.1} parent=5 // pred_check
        %p591 = pneg %p590
      $region50: #{tpu_custom_call.1} parent=5 // pred_check_branch
        %593 = sbr.rel (%p591) target = $region52
      $region51: #{tpu_custom_call.1} parent=5 // pred_region
        %s594 = ssub.s32 %s15, 2
        // Predicated region
        $region53: #{tpu_custom_call.1} parent=51 // pred_check
          %p595 = pneg %p121
        $region54: #{tpu_custom_call.1} parent=51 // pred_check_branch
          %597 = sbr.rel (%p595) target = $region56
        $region55: #{tpu_custom_call.1} parent=51 // pred_region
          %s598 = sand.u32 %s106, 1
          %s599 = scalar_lea.sflag [#allocation5], %s598
          %s600 = sand.u32 %s106, 1
          %s601 = smul.addr %s600, 32
          %s602 = scalar_lea.vmem [#allocation8], %s601
          %603 = dma.done %s599, 512
        $region56: #{tpu_custom_call.1} parent=51 // pred_fallthru
          _
      $region52: #{tpu_custom_call.1} parent=5 // pred_fallthru
        _
    $region6: #{tpu_custom_call.1} parent=1 // loop_footer
      %s19 = sadd.s32 1, %s15
    $region7: #{tpu_custom_call.1} parent=1 // loop_footer_branch
      %14 = sbr.rel target = $region3
    $region8: #{tpu_custom_call.1} parent=1 // loop_exit
      _
    %604 = vsyncpa [#allocation4], 1
    %s605 = scalar_lea.sflag [#allocation4], 1
    %606 = vsyncpa %s605, 1
    %607 = vsyncpa [#allocation7], 1
    %s608 = scalar_lea.sflag [#allocation7], 1
    %609 = vsyncpa %s608, 1
    %610 = vsyncpa [#allocation5], 1
    %s611 = scalar_lea.sflag [#allocation5], 1
    %612 = vsyncpa %s611, 1

</llo_original>
